<compile_context>
chip_gen: v7x
topology: tpu7x:2x2x1
jax: 0.10.0
libtpu: 0.0.40
codegen_flags: <defaults>
</compile_context>

<pallas_src>
import numpy as np
import jax
import jax.numpy as jnp
from jax import lax
from jax.experimental import pallas as pl
from jax.experimental.pallas import tpu as pltpu


def _make_partial_sum_kernel(rows, cols, tile_r, tile_c):
    """Kernel: per-tile sum of squared differences -> SMEM (1,1) output."""
    need_row_mask = (rows % tile_r) != 0
    need_col_mask = (cols % tile_c) != 0

    def kernel(pred_ref, tgt_ref, out_ref):
        d = pred_ref[...].astype(jnp.float32) - tgt_ref[...].astype(jnp.float32)
        sq = d * d
        if need_row_mask or need_col_mask:
            valid = None
            if need_row_mask:
                r0 = pl.program_id(0) * tile_r
                ridx = lax.broadcasted_iota(jnp.int32, (tile_r, tile_c), 0) + r0
                valid = ridx < rows
            if need_col_mask:
                c0 = pl.program_id(1) * tile_c
                cidx = lax.broadcasted_iota(jnp.int32, (tile_r, tile_c), 1) + c0
                vc = cidx < cols
                valid = vc if valid is None else (valid & vc)
            sq = jnp.where(valid, sq, jnp.float32(0.0))
        out_ref[0, 0] = jnp.sum(sq)

    return kernel


def _choose_tiles(rows, cols, elem_bytes, target_tile_bytes=4 * 1024 * 1024):
    """Pick (tile_r, tile_c) sized by bytes (~target per input block)."""
    # Lane (last) dim: multiple of 128, or the full dim when not 128-divisible.
    if cols % 128 == 0:
        max_c = max(128, (target_tile_bytes // (8 * elem_bytes)) // 128 * 128)
        tile_c = min(cols, max_c)
    else:
        tile_c = cols  # full-extent block is always legal
    # Sublane (second-to-last) granularity depends on dtype packing.
    sub = {4: 8, 2: 16, 1: 32}.get(elem_bytes, 8)
    max_r = max(sub, (target_tile_bytes // (tile_c * elem_bytes)) // sub * sub)
    tile_r = rows if rows <= max_r else max_r
    return tile_r, tile_c


def j_mse_loss(output, target):
    """Pallas equivalent of J_MSELoss.forward(output, target)."""
    assert output.shape == target.shape
    B, J = output.shape[0], output.shape[1]
    hw = int(np.prod(output.shape[2:]))
    rows = B * J

    # Reshape is a metadata-only view (no HBM copy); dtype kept as-is and
    # cast to f32 inside the kernel so bf16 inputs only move half the bytes.
    pred = output.reshape(rows, hw)
    tgt = target.reshape(rows, hw)

    elem_bytes = int(np.dtype(pred.dtype).itemsize)
    tile_r, tile_c = _choose_tiles(rows, hw, elem_bytes)
    n_r = pl.cdiv(rows, tile_r)
    n_c = pl.cdiv(hw, tile_c)

    # 2 inputs x 2 pipeline buffers + headroom; clamp so it is valid on
    # v5e/v6e (128 MiB) and v7x (64 MiB physical VMEM).
    tile_bytes = tile_r * tile_c * elem_bytes
    vmem_limit = int(min(max(4 * tile_bytes + (8 << 20), 32 << 20), 56 << 20))

    n_elems = rows * hw
    cost = pl.CostEstimate(
        flops=3 * n_elems,
        transcendentals=0,
        bytes_accessed=2 * n_elems * elem_bytes + n_r * n_c * 4,
    )

    kernel = _make_partial_sum_kernel(rows, hw, tile_r, tile_c)

    partials = pl.pallas_call(
        kernel,
        out_shape=jax.ShapeDtypeStruct((n_r, n_c), jnp.float32),
        grid_spec=pltpu.PrefetchScalarGridSpec(
            num_scalar_prefetch=0,
            grid=(n_r, n_c),
            in_specs=[
                pl.BlockSpec((tile_r, tile_c), lambda i, j: (i, j)),
                pl.BlockSpec((tile_r, tile_c), lambda i, j: (i, j)),
            ],
            out_specs=pl.BlockSpec(
                (1, 1), lambda i, j: (i, j),
                memory_space=pltpu.MemorySpace.SMEM,
            ),
        ),
        compiler_params=pltpu.CompilerParams(
            dimension_semantics=("parallel", "parallel"),
            vmem_limit_bytes=vmem_limit,
        ),
        cost_estimate=cost,
    )(pred, tgt)

    # loss = sum_j 0.5 * mean_{b,hw}((p-g)^2) = 0.5 * total / (B * hw)
    total = jnp.sum(partials)
    loss = total * (0.5 / (B * hw))
    return loss.astype(jnp.float32)


def _reference_loss(output, target):
    B, J = output.shape[0], output.shape[1]
    hw = int(np.prod(output.shape[2:]))
    p = output.reshape(B, J, hw).astype(jnp.float32)
    g = target.reshape(B, J, hw).astype(jnp.float32)
    per_joint = jnp.mean((p - g) ** 2, axis=(0, 2))  # mean over (B, hw) per joint
    return 0.5 * jnp.sum(per_joint)


if __name__ == "__main__":
    key = jax.random.PRNGKey(0)
    k1, k2 = jax.random.split(key)
    B, J, H, W = 2, 4, 16, 16  # small shapes consistent with heatmap regression
    output = jax.random.normal(k1, (B, J, H, W), dtype=jnp.float32)
    target = jax.random.normal(k2, (B, J, H, W), dtype=jnp.float32)

    loss = jax.block_until_ready(j_mse_loss(output, target))
    ref = jax.block_until_ready(_reference_loss(output, target))

    assert np.allclose(np.asarray(loss), np.asarray(ref), rtol=1e-5, atol=1e-6), (
        loss, ref)
    print("KERNEL_OK")
</pallas_src>

<mosaic_0001>
module attributes {stable_mosaic.version = 11 : i64} {
  func.func @kernel(%arg0: i32, %arg1: i32, %arg2: memref<8x256xf32, #tpu.memory_space<vmem>>, %arg3: memref<8x256xf32, #tpu.memory_space<vmem>>, %arg4: memref<1x1xf32, #tpu.memory_space<smem>>) attributes {dimension_semantics = [#tpu.dimension_semantics<parallel>, #tpu.dimension_semantics<parallel>], iteration_bounds = array<i64: 1, 1>, scalar_prefetch = 0 : i64, scratch_operands = 0 : i64, tpu.core_type = #tpu.core_type<tc>, window_params = [{transform_indices = @transform_0, window_bounds = array<i64: 8, 256>}, {transform_indices = @transform_1, window_bounds = array<i64: 8, 256>}, {transform_indices = @transform_2, window_bounds = array<i64: 1, 1>}]} {
    %c0 = arith.constant 0 : index
    %c0_0 = arith.constant 0 : index
    %0 = vector.load %arg2[%c0, %c0_0] : memref<8x256xf32, #tpu.memory_space<vmem>>, vector<8x256xf32>
    %c0_1 = arith.constant 0 : index
    %c0_2 = arith.constant 0 : index
    %1 = vector.load %arg3[%c0_1, %c0_2] : memref<8x256xf32, #tpu.memory_space<vmem>>, vector<8x256xf32>
    %2 = arith.subf %0, %1 : vector<8x256xf32>
    %3 = arith.mulf %2, %2 : vector<8x256xf32>
    %4 = vector.shape_cast %3 : vector<8x256xf32> to vector<1x8x256xf32>
    %cst = arith.constant dense<0.000000e+00> : vector<1xf32>
    %5 = vector.multi_reduction <add>, %4, %cst [1, 2] : vector<1x8x256xf32> to vector<1xf32>
    %6 = vector.shape_cast %5 : vector<1xf32> to vector<1x1x1xf32>
    %7 = vector.extract %6[0, 0, 0] : f32 from vector<1x1x1xf32>
    %c0_3 = arith.constant 0 : index
    %c0_4 = arith.constant 0 : index
    %8 = memref.load %arg4[%c0_3, %c0_4] : memref<1x1xf32, #tpu.memory_space<smem>>
    memref.store %7, %arg4[%c0_3, %c0_4] : memref<1x1xf32, #tpu.memory_space<smem>>
    return
  }
  func.func @transform_0(%arg0: i32, %arg1: i32) -> (i32, i32) {
    %c0_i32 = arith.constant 0 : i32
    return %arg0, %arg1 : i32, i32
  }
  func.func @transform_1(%arg0: i32, %arg1: i32) -> (i32, i32) {
    %c0_i32 = arith.constant 0 : i32
    return %arg0, %arg1 : i32, i32
  }
  func.func @transform_2(%arg0: i32, %arg1: i32) -> (i32, i32) {
    %c0_i32 = arith.constant 0 : i32
    return %arg0, %arg1 : i32, i32
  }
}

</mosaic_0001>

<llo_original>
// kernel: tpu_custom_call.1
$region0: #{tpu_custom_call.1}
  #allocation0 [shape = 'u32[]', space=smem, size = 0x4, offset = 0x4, fixed_abs, tag = 'smem constant byte address 0x4 - core index']
  #allocation1 [shape = 'u32[144,128]{1,0:T(1,128)}', space=vmem, size = 0x12000, scoped, tag = 'internal scratch']
  %s0 = inlined_call_operand.hbm [shape: f32[8,256], index: 0, kind: input, shape index: {}]
  %s1 = inlined_call_operand.hbm [shape: f32[8,256], index: 1, kind: input, shape index: {}]
  %s2 = inlined_call_operand.hbm [shape: f32[1,1], index: 2, kind: output, shape index: {}]
  %s3 = sld [smem:[#allocation0]]
  $region26: #{tpu_custom_call.1} parent=0
    _
  %s5 = ssub.s32 1, %s3
  %s6 = scalar_select 0, %s5, %s3
  $region1: #{tpu_custom_call.1} parent=0
    #allocation2 [shape = 'u8[8192]{0}', space=vmem, size = 0x2000, scoped, tag = 'input window, operand 0, single buffered']
    #allocation3 [shape = 's32[1]{0}', space=sflag, size = 0x4, scoped, tag = 'scoped memory for tpu_custom_call.1']
    #allocation4 [shape = 's32[1]{0}', space=sflag, size = 0x4, scoped, tag = 'scoped memory for tpu_custom_call.1']
    #allocation5 [shape = 'u8[8192]{0}', space=vmem, size = 0x2000, scoped, tag = 'input window, operand 1, single buffered']
    #allocation6 [shape = 's32[1]{0}', space=sflag, size = 0x4, scoped, tag = 'scoped memory for tpu_custom_call.1']
    #allocation7 [shape = 'u8[512]{0}', space=smem, size = 0x200, scoped, tag = 'output window, operand 0, single buffered']
    %7 = vsyncpa [#allocation3], 0
    %8 = vsyncpa [#allocation6], 0
    %9 = vsyncpa [#allocation4], 0
    // Predicated region
    $region2: #{tpu_custom_call.1} parent=1 // pred_check
      _
    $region3: #{tpu_custom_call.1} parent=1 // pred_check_branch
      %11 = sbr.rel (0) target = $region5
    $region4: #{tpu_custom_call.1} parent=1 // pred_region
      %s13 = ssub.s32 256, 256
      %14 = vsyncadd [#allocation3], %s13
      %s16 = sshll.u32 [#allocation2], 4
      %s17 = int_to_ptr.vmem [resolvable:$true] %s16
      %19 = dma.hbm_to_vmem [thread:$0]  %s0, 256, %s17, [#allocation3]
    $region5: #{tpu_custom_call.1} parent=1 // pred_fallthru
      _
    // Predicated region
    $region6: #{tpu_custom_call.1} parent=1 // pred_check
      _
    $region7: #{tpu_custom_call.1} parent=1 // pred_check_branch
      %21 = sbr.rel (0) target = $region9
    $region8: #{tpu_custom_call.1} parent=1 // pred_region
      %s23 = ssub.s32 256, 256
      %24 = vsyncadd [#allocation6], %s23
      %s26 = sshll.u32 [#allocation5], 4
      %s27 = int_to_ptr.vmem [resolvable:$true] %s26
      %29 = dma.hbm_to_vmem [thread:$0]  %s1, 256, %s27, [#allocation6]
    $region9: #{tpu_custom_call.1} parent=1 // pred_fallthru
      _
    // Predicated region
    $region10: #{tpu_custom_call.1} parent=1 // pred_check
      _
    $region11: #{tpu_custom_call.1} parent=1 // pred_check_branch
      %31 = sbr.rel (0) target = $region13
    $region12: #{tpu_custom_call.1} parent=1 // pred_region
      %32 = dma.done [#allocation3], 256
    $region13: #{tpu_custom_call.1} parent=1 // pred_fallthru
      _
    // Predicated region
    $region14: #{tpu_custom_call.1} parent=1 // pred_check
      _
    $region15: #{tpu_custom_call.1} parent=1 // pred_check_branch
      %34 = sbr.rel (0) target = $region17
    $region16: #{tpu_custom_call.1} parent=1 // pred_region
      %35 = dma.done [#allocation6], 256
    $region17: #{tpu_custom_call.1} parent=1 // pred_fallthru
      _
    %v36 = vld [vmem:[#allocation2] sm:$0xff]
    %v37 = vld [vmem:[#allocation2 + $0x8] sm:$0xff]
    %v38 = vld [vmem:[#allocation5] sm:$0xff]
    %v39 = vld [vmem:[#allocation5 + $0x8] sm:$0xff]
    %v40 = vsub.f32 %v36, %v38
    %v41 = vsub.f32 %v37, %v39
    %v42 = vmul.f32 %v40, %v40
    %v43 = vmul.f32 %v41, %v41
    %v44 = vadd.f32 %v42, %v43
    %45 = vadd.xlane.f32.xlu0 %v44
    %v46 = vpop.xlane.xlu0 %45
    %v47 = vrot.slane %v46, 4
    %v48 = vadd.f32 %v46, %v47
    %v49 = vrot.slane %v48, 2
    %v50 = vadd.f32 %v48, %v49
    %v51 = vrot.slane %v50, 1
    %v52 = vadd.f32 %v50, %v51
    %s53 = vtos %v52
    %s54 = scalar_lea.smem [#allocation7], 0
    %55 = sst [smem:[%s54]] %s53
    // Predicated region
    $region18: #{tpu_custom_call.1} parent=1 // pred_check
      _
    $region19: #{tpu_custom_call.1} parent=1 // pred_check_branch
      %57 = sbr.rel (0) target = $region21
    $region20: #{tpu_custom_call.1} parent=1 // pred_region
      %s59 = ssub.s32 16, 16
      %60 = vsyncadd [#allocation4], %s59
      %63 = dma.smem_to_hbm [#allocation7], 16, %s2, [#allocation4]
    $region21: #{tpu_custom_call.1} parent=1 // pred_fallthru
      _
    // Predicated region
    $region22: #{tpu_custom_call.1} parent=1 // pred_check
      _
    $region23: #{tpu_custom_call.1} parent=1 // pred_check_branch
      %65 = sbr.rel (0) target = $region25
    $region24: #{tpu_custom_call.1} parent=1 // pred_region
      %66 = dma.done [#allocation4], 16
    $region25: #{tpu_custom_call.1} parent=1 // pred_fallthru
      _
    %67 = sfence
    %68 = vsyncpa [#allocation3], 1
    %69 = vsyncpa [#allocation6], 1
    %70 = vsyncpa [#allocation4], 1

</llo_original>
